<compile_context>
chip_gen: v5e
topology: v5e:2x2
jax: 0.10.0
libtpu: 0.0.40
codegen_flags: <defaults>
</compile_context>

<pallas_src>
import numpy as np
import jax
import jax.numpy as jnp
from jax import lax
from jax.experimental import pallas as pl
from jax.experimental.pallas import tpu as pltpu

BN_EPS = 1e-5
VMEM_LIMIT = 32 * 1024 * 1024  # explicit, fits comfortably on v5e/v6e/v7x


# --------------------------- host-side constant tables ---------------------------- #

def make_upsample_matrix(h):
    """Row-interpolation matrix for bilinear x2 upsampling with align_corners=True."""
    o = 2 * h
    a = np.zeros((o, h), dtype=np.float32)
    if h == 1:
        a[:, 0] = 1.0
        return a
    scale = (h - 1) / (o - 1)
    for i in range(o):
        src = i * scale
        i0 = min(int(np.floor(src)), h - 1)
        i1 = min(i0 + 1, h - 1)
        f = src - i0
        a[i, i0] += 1.0 - f
        a[i, i1] += f
    return a


def make_tap_masks(h, w):
    """(9, h*w) multiplicative masks zeroing out-of-bounds taps of the rolled 3x3 windows."""
    yy = np.repeat(np.arange(h), w)
    xx = np.tile(np.arange(w), h)
    m = np.zeros((9, h * w), np.float32)
    k = 0
    for dy in range(3):
        for dx in range(3):
            ok = ((yy + dy - 1 >= 0) & (yy + dy - 1 < h) &
                  (xx + dx - 1 >= 0) & (xx + dx - 1 < w))
            m[k] = ok.astype(np.float32)
            k += 1
    return m


# ------------------------------- Pallas kernels ------------------------------------ #

def conv3x3_stats(x_flat, wt, masks, w_spatial):
    """Fused 3x3 conv (single K=9*Cin dot) + per-channel sum / sumsq over the batch.

    x_flat: (N, Cin, H*W) f32  (NCHW flattened; lane-dense)
    wt    : (Cout, 9*Cin) f32  (rows: cout; cols ordered (dy, dx, cin))
    masks : (9, H*W) f32       border masks for the 9 taps
    Returns y: (N, Cout, H*W), stats: (Cout, 2) = [sum, sumsq].
    """
    N, Cin, HW = x_flat.shape
    Cout = wt.shape[0]
    offs = [(dy - 1) * w_spatial + (dx - 1) for dy in range(3) for dx in range(3)]

    def kernel(x_ref, wt_ref, mask_ref, y_ref, stats_ref):
        n = pl.program_id(0)

        @pl.when(n == 0)
        def _init():
            stats_ref[...] = jnp.zeros_like(stats_ref)

        x2d = x_ref[0]                                        # (Cin, HW), lane-dense
        taps = []
        for k, o in enumerate(offs):
            t = x2d if o == 0 else pltpu.roll(x2d, shift=(-o) % HW, axis=1)
            taps.append(t * mask_ref[k:k + 1, :])             # zero out-of-bounds taps
        patches = jnp.concatenate(taps, axis=0)               # (9*Cin, HW)
        y = jnp.dot(wt_ref[...], patches,
                    preferred_element_type=jnp.float32)       # (Cout, HW) -- one MXU dot
        y_ref[0] = y                                          # lane-dense store
        stats_ref[:, 0:1] += jnp.sum(y, axis=1, keepdims=True)
        stats_ref[:, 1:2] += jnp.sum(y * y, axis=1, keepdims=True)

    return pl.pallas_call(
        kernel,
        out_shape=(jax.ShapeDtypeStruct((N, Cout, HW), jnp.float32),
                   jax.ShapeDtypeStruct((Cout, 2), jnp.float32)),
        grid=(N,),
        in_specs=[
            pl.BlockSpec((1, Cin, HW), lambda n: (n, 0, 0)),
            pl.BlockSpec((Cout, 9 * Cin), lambda n: (0, 0)),
            pl.BlockSpec((9, HW), lambda n: (0, 0)),
        ],
        out_specs=(pl.BlockSpec((1, Cout, HW), lambda n: (n, 0, 0)),
                   pl.BlockSpec((Cout, 2), lambda n: (0, 0))),
        compiler_params=pltpu.CompilerParams(
            dimension_semantics=("arbitrary",),          # stats reduce over the batch axis
            vmem_limit_bytes=VMEM_LIMIT),
    )(x_flat, wt, masks)


def bn_relu_upsample(y_flat, scale, bias, ah, awt, H, W):
    """Fused BN-apply + ReLU + bilinear x2 upsample. grid = (N, C), fully parallel."""
    N, C, _ = y_flat.shape
    y4 = y_flat.reshape(N, C, H, W)                           # free metadata reshape in HBM
    O, P = ah.shape[0], awt.shape[1]

    def kernel(scale_ref, bias_ref, y_ref, ah_ref, awt_ref, o_ref):
        c = pl.program_id(1)
        # single fused broadcast FMA + ReLU over the whole (H, W) tile
        z = jnp.maximum(y_ref[0, 0] * scale_ref[c] + bias_ref[c], 0.0)        # (H, W)
        t = jnp.dot(ah_ref[...], z, preferred_element_type=jnp.float32)       # (2H, W)
        o_ref[0, 0] = jnp.dot(t, awt_ref[...],
                              preferred_element_type=jnp.float32)             # (2H, 2W)

    return pl.pallas_call(
        kernel,
        out_shape=jax.ShapeDtypeStruct((N, C, O, P), jnp.float32),
        grid=(N, C),
        in_specs=[
            pl.BlockSpec(memory_space=pltpu.MemorySpace.SMEM),
            pl.BlockSpec(memory_space=pltpu.MemorySpace.SMEM),
            pl.BlockSpec((1, 1, H, W), lambda n, c: (n, c, 0, 0)),
            pl.BlockSpec((O, H), lambda n, c: (0, 0)),
            pl.BlockSpec((W, P), lambda n, c: (0, 0)),
        ],
        out_specs=pl.BlockSpec((1, 1, O, P), lambda n, c: (n, c, 0, 0)),
        compiler_params=pltpu.CompilerParams(
            dimension_semantics=("parallel", "parallel"),
            vmem_limit_bytes=VMEM_LIMIT),
    )(scale, bias, y4, ah, awt)


def bn_relu(y_flat, scale, bias):
    """BN-apply + ReLU only (n_upsamples == 0 case), lane-dense (C, H*W) tiles."""
    N, C, HW = y_flat.shape

    def kernel(y_ref, s_ref, b_ref, o_ref):
        o_ref[0] = jnp.maximum(y_ref[0] * s_ref[...] + b_ref[...], 0.0)

    return pl.pallas_call(
        kernel,
        out_shape=jax.ShapeDtypeStruct((N, C, HW), jnp.float32),
        grid=(N,),
        in_specs=[
            pl.BlockSpec((1, C, HW), lambda n: (n, 0, 0)),
            pl.BlockSpec((C, 1), lambda n: (0, 0)),
            pl.BlockSpec((C, 1), lambda n: (0, 0)),
        ],
        out_specs=pl.BlockSpec((1, C, HW), lambda n: (n, 0, 0)),
        compiler_params=pltpu.CompilerParams(
            dimension_semantics=("parallel",),
            vmem_limit_bytes=VMEM_LIMIT),
    )(y_flat, scale.reshape(C, 1), bias.reshape(C, 1))


# ------------------------------ module-level plumbing ------------------------------- #

def init_segmentation_block(key, in_channels, out_channels, n_upsamples, H, W):
    """Synthetic params + all hoisted constant tables, per sub-block."""
    n_blocks = max(n_upsamples, 1)
    params = []
    cin, h, w = in_channels, H, W
    for b in range(n_blocks):
        key, k1, k2, k3 = jax.random.split(key, 4)
        w_hwio = 0.1 * jax.random.normal(k1, (3, 3, cin, out_channels), jnp.float32)
        up = bool(n_upsamples) if b == 0 else True
        params.append(dict(
            w=w_hwio,                                                        # for the reference
            wt=jnp.transpose(w_hwio.reshape(9 * cin, out_channels)),         # (Cout, 9*Cin)
            gamma=1.0 + 0.1 * jax.random.normal(k2, (out_channels,), jnp.float32),
            beta=0.1 * jax.random.normal(k3, (out_channels,), jnp.float32),
            masks=jnp.asarray(make_tap_masks(h, w)),
            ah=jnp.asarray(make_upsample_matrix(h)) if up else None,
            awt=jnp.asarray(np.ascontiguousarray(make_upsample_matrix(w).T)) if up else None,
            upsample=up,
        ))
        cin = out_channels
        if up:
            h, w = 2 * h, 2 * w
    return params


def segmentation_block_forward(x_nchw, params):
    N, C0, H, W = x_nchw.shape
    x_flat = x_nchw.reshape(N, C0, H * W)                     # NCHW flattened, no copy
    for p in params:
        Cout = p["wt"].shape[0]
        y_flat, stats = conv3x3_stats(x_flat, p["wt"], p["masks"], W)
        cnt = float(N * H * W)
        mean = stats[:, 0] / cnt
        # E[x^2]-E[x]^2 can go slightly negative under f32 cancellation -> clamp.
        var = jnp.maximum(stats[:, 1] / cnt - mean * mean, 0.0)
        scale = p["gamma"] * lax.rsqrt(var + BN_EPS)
        bias = p["beta"] - mean * scale
        if p["upsample"]:
            out = bn_relu_upsample(y_flat, scale, bias, p["ah"], p["awt"], H, W)
            H, W = 2 * H, 2 * W
            x_flat = out.reshape(N, Cout, H * W)              # free reshape, stays NCHW
        else:
            x_flat = bn_relu(y_flat, scale, bias)
    return x_flat.reshape(N, x_flat.shape[1], H, W)           # NCHW, like PyTorch


# ----------------------------------- reference -------------------------------------- #

def reference_forward(x_nchw, params):
    x = jnp.transpose(x_nchw, (0, 2, 3, 1))
    for p in params:
        y = lax.conv_general_dilated(
            x, p["w"], window_strides=(1, 1), padding=((1, 1), (1, 1)),
            dimension_numbers=("NHWC", "HWIO", "NHWC"))
        mean = jnp.mean(y, axis=(0, 1, 2))
        var = jnp.var(y, axis=(0, 1, 2))
        z = (y - mean) / jnp.sqrt(var + BN_EPS) * p["gamma"] + p["beta"]
        z = jnp.maximum(z, 0.0)
        if p["upsample"]:
            H, W = z.shape[1], z.shape[2]
            ah = jnp.asarray(make_upsample_matrix(H))
            aw = jnp.asarray(make_upsample_matrix(W))
            z = jnp.einsum("oh,nhwc->nowc", ah, z)
            z = jnp.einsum("pw,nowc->nopc", aw, z)
        x = z
    return jnp.transpose(x, (0, 3, 1, 2))


# ------------------------------------- main ------------------------------------------ #

if __name__ == "__main__":
    key = jax.random.PRNGKey(0)
    N, Cin, H, W = 2, 4, 16, 16
    Cout, n_upsamples = 8, 2

    key, kx = jax.random.split(key)
    x = jax.random.normal(kx, (N, Cin, H, W), jnp.float32)    # NCHW, like PyTorch

    params = init_segmentation_block(key, Cin, Cout, n_upsamples, H, W)

    out = segmentation_block_forward(x, params)
    out = jax.block_until_ready(out)

    ref = jax.block_until_ready(reference_forward(x, params))

    assert out.shape == (N, Cout, H * (2 ** n_upsamples), W * (2 ** n_upsamples)), out.shape
    assert jnp.allclose(out, ref, atol=2e-3, rtol=2e-3), float(jnp.max(jnp.abs(out - ref)))

    print("KERNEL_OK")
</pallas_src>

<mosaic_0001>
module attributes {stable_mosaic.version = 11 : i64} {
  func.func @kernel(%arg0: i32, %arg1: memref<1x4x256xf32, #tpu.memory_space<vmem>>, %arg2: memref<8x36xf32, #tpu.memory_space<vmem>>, %arg3: memref<9x256xf32, #tpu.memory_space<vmem>>, %arg4: memref<1x8x256xf32, #tpu.memory_space<vmem>>, %arg5: memref<8x2xf32, #tpu.memory_space<vmem>>) attributes {dimension_semantics = [#tpu.dimension_semantics<arbitrary>], iteration_bounds = array<i64: 2>, scalar_prefetch = 0 : i64, scratch_operands = 0 : i64, tpu.core_type = #tpu.core_type<tc>, window_params = [{transform_indices = @transform_0, window_bounds = array<i64: 1, 4, 256>}, {pipeline_mode = #tpu.pipeline_mode<synchronous>, transform_indices = @transform_1, window_bounds = array<i64: 8, 36>}, {pipeline_mode = #tpu.pipeline_mode<synchronous>, transform_indices = @transform_2, window_bounds = array<i64: 9, 256>}, {transform_indices = @transform_3, window_bounds = array<i64: 1, 8, 256>}, {pipeline_mode = #tpu.pipeline_mode<synchronous>, transform_indices = @transform_4, window_bounds = array<i64: 8, 2>}]} {
    %c0_i32 = arith.constant 0 : i32
    %0 = arith.cmpi eq, %arg0, %c0_i32 : i32
    %1 = arith.extui %0 : i1 to i32
    %c0_i32_0 = arith.constant 0 : i32
    %2 = arith.cmpi ne, %1, %c0_i32_0 : i32
    scf.if %2 {
      %cst_28 = arith.constant 0.000000e+00 : f32
      %57 = vector.broadcast %cst_28 : f32 to vector<8x2xf32>
      %c0_29 = arith.constant 0 : index
      %c0_30 = arith.constant 0 : index
      %58 = vector.load %arg5[%c0_29, %c0_30] : memref<8x2xf32, #tpu.memory_space<vmem>>, vector<8x2xf32>
      tpu.vector_store %arg5[%c0_29, %c0_30], %57 {strides = array<i32>} : memref<8x2xf32, #tpu.memory_space<vmem>>, vector<8x2xf32>,
    } else {
    }
    %c0 = arith.constant 0 : index
    %c0_1 = arith.constant 0 : index
    %c0_2 = arith.constant 0 : index
    %3 = vector.load %arg1[%c0, %c0_1, %c0_2] : memref<1x4x256xf32, #tpu.memory_space<vmem>>, vector<1x4x256xf32>
    %4 = vector.shape_cast %3 : vector<1x4x256xf32> to vector<4x256xf32>
    %c17_i32 = arith.constant 17 : i32
    %5 = tpu.dynamic_rotate %4 by %c17_i32 dim 1 : vector<4x256xf32>, i32 -> vector<4x256xf32>
    %c0_3 = arith.constant 0 : index
    %c0_4 = arith.constant 0 : index
    %6 = vector.load %arg3[%c0_3, %c0_4] : memref<9x256xf32, #tpu.memory_space<vmem>>, vector<1x256xf32>
    %7 = vector.broadcast %6 : vector<1x256xf32> to vector<4x256xf32>
    %8 = arith.mulf %5, %7 : vector<4x256xf32>
    %c16_i32 = arith.constant 16 : i32
    %9 = tpu.dynamic_rotate %4 by %c16_i32 dim 1 : vector<4x256xf32>, i32 -> vector<4x256xf32>
    %c1 = arith.constant 1 : index
    %c0_5 = arith.constant 0 : index
    %10 = vector.load %arg3[%c1, %c0_5] : memref<9x256xf32, #tpu.memory_space<vmem>>, vector<1x256xf32>
    %11 = vector.broadcast %10 : vector<1x256xf32> to vector<4x256xf32>
    %12 = arith.mulf %9, %11 : vector<4x256xf32>
    %c15_i32 = arith.constant 15 : i32
    %13 = tpu.dynamic_rotate %4 by %c15_i32 dim 1 : vector<4x256xf32>, i32 -> vector<4x256xf32>
    %c2 = arith.constant 2 : index
    %c0_6 = arith.constant 0 : index
    %14 = vector.load %arg3[%c2, %c0_6] : memref<9x256xf32, #tpu.memory_space<vmem>>, vector<1x256xf32>
    %15 = vector.broadcast %14 : vector<1x256xf32> to vector<4x256xf32>
    %16 = arith.mulf %13, %15 : vector<4x256xf32>
    %c1_i32 = arith.constant 1 : i32
    %17 = tpu.dynamic_rotate %4 by %c1_i32 dim 1 : vector<4x256xf32>, i32 -> vector<4x256xf32>
    %c3 = arith.constant 3 : index
    %c0_7 = arith.constant 0 : index
    %18 = vector.load %arg3[%c3, %c0_7] : memref<9x256xf32, #tpu.memory_space<vmem>>, vector<1x256xf32>
    %19 = vector.broadcast %18 : vector<1x256xf32> to vector<4x256xf32>
    %20 = arith.mulf %17, %19 : vector<4x256xf32>
    %c4 = arith.constant 4 : index
    %c0_8 = arith.constant 0 : index
    %21 = vector.load %arg3[%c4, %c0_8] : memref<9x256xf32, #tpu.memory_space<vmem>>, vector<1x256xf32>
    %22 = vector.broadcast %21 : vector<1x256xf32> to vector<4x256xf32>
    %23 = arith.mulf %4, %22 : vector<4x256xf32>
    %c255_i32 = arith.constant 255 : i32
    %24 = tpu.dynamic_rotate %4 by %c255_i32 dim 1 : vector<4x256xf32>, i32 -> vector<4x256xf32>
    %c5 = arith.constant 5 : index
    %c0_9 = arith.constant 0 : index
    %25 = vector.load %arg3[%c5, %c0_9] : memref<9x256xf32, #tpu.memory_space<vmem>>, vector<1x256xf32>
    %26 = vector.broadcast %25 : vector<1x256xf32> to vector<4x256xf32>
    %27 = arith.mulf %24, %26 : vector<4x256xf32>
    %c241_i32 = arith.constant 241 : i32
    %28 = tpu.dynamic_rotate %4 by %c241_i32 dim 1 : vector<4x256xf32>, i32 -> vector<4x256xf32>
    %c6 = arith.constant 6 : index
    %c0_10 = arith.constant 0 : index
    %29 = vector.load %arg3[%c6, %c0_10] : memref<9x256xf32, #tpu.memory_space<vmem>>, vector<1x256xf32>
    %30 = vector.broadcast %29 : vector<1x256xf32> to vector<4x256xf32>
    %31 = arith.mulf %28, %30 : vector<4x256xf32>
    %c240_i32 = arith.constant 240 : i32
    %32 = tpu.dynamic_rotate %4 by %c240_i32 dim 1 : vector<4x256xf32>, i32 -> vector<4x256xf32>
    %c7 = arith.constant 7 : index
    %c0_11 = arith.constant 0 : index
    %33 = vector.load %arg3[%c7, %c0_11] : memref<9x256xf32, #tpu.memory_space<vmem>>, vector<1x256xf32>
    %34 = vector.broadcast %33 : vector<1x256xf32> to vector<4x256xf32>
    %35 = arith.mulf %32, %34 : vector<4x256xf32>
    %c239_i32 = arith.constant 239 : i32
    %36 = tpu.dynamic_rotate %4 by %c239_i32 dim 1 : vector<4x256xf32>, i32 -> vector<4x256xf32>
    %c8 = arith.constant 8 : index
    %c0_12 = arith.constant 0 : index
    %37 = vector.load %arg3[%c8, %c0_12] : memref<9x256xf32, #tpu.memory_space<vmem>>, vector<1x256xf32>
    %38 = vector.broadcast %37 : vector<1x256xf32> to vector<4x256xf32>
    %39 = arith.mulf %36, %38 : vector<4x256xf32>
    %40 = tpu.concatenate %8, %12, %16, %20, %23, %27, %31, %35, %39 in 0 : vector<4x256xf32>, vector<4x256xf32>, vector<4x256xf32>, vector<4x256xf32>, vector<4x256xf32>, vector<4x256xf32>, vector<4x256xf32>, vector<4x256xf32>, vector<4x256xf32> -> vector<36x256xf32>
    %c0_13 = arith.constant 0 : index
    %c0_14 = arith.constant 0 : index
    %41 = vector.load %arg2[%c0_13, %c0_14] : memref<8x36xf32, #tpu.memory_space<vmem>>, vector<8x36xf32>
    %cst = arith.constant dense<0.000000e+00> : vector<8x256xf32>
    %42 = tpu.matmul %41, %40, %cst {dimension_numbers = #tpu.dot_dimension_numbers<[1], [0], [0], [1], [0, 0, 1, 1], [], []>} : vector<8x36xf32>, vector<36x256xf32>, vector<8x256xf32> -> vector<8x256xf32>
    %c0_15 = arith.constant 0 : index
    %c0_16 = arith.constant 0 : index
    %c0_17 = arith.constant 0 : index
    %43 = vector.load %arg4[%c0_15, %c0_16, %c0_17] : memref<1x8x256xf32, #tpu.memory_space<vmem>>, vector<1x8x256xf32>
    %44 = vector.shape_cast %43 : vector<1x8x256xf32> to vector<8x256xf32>
    %45 = vector.shape_cast %42 : vector<8x256xf32> to vector<1x8x256xf32>
    tpu.vector_store %arg4[%c0_15, %c0_16, %c0_17], %45 {strides = array<i32>} : memref<1x8x256xf32, #tpu.memory_space<vmem>>, vector<1x8x256xf32>,
    %c0_18 = arith.constant 0 : index
    %c0_19 = arith.constant 0 : index
    %46 = vector.load %arg5[%c0_18, %c0_19] : memref<8x2xf32, #tpu.memory_space<vmem>>, vector<8x1xf32>
    %cst_20 = arith.constant dense<0.000000e+00> : vector<8xf32>
    %47 = vector.multi_reduction <add>, %42, %cst_20 [1] : vector<8x256xf32> to vector<8xf32>
    %48 = vector.shape_cast %47 : vector<8xf32> to vector<8x1xf32>
    %49 = arith.addf %46, %48 : vector<8x1xf32>
    %c0_21 = arith.constant 0 : index
    %c0_22 = arith.constant 0 : index
    %50 = vector.load %arg5[%c0_21, %c0_22] : memref<8x2xf32, #tpu.memory_space<vmem>>, vector<8x1xf32>
    tpu.vector_store %arg5[%c0_21, %c0_22], %49 {strides = array<i32>} : memref<8x2xf32, #tpu.memory_space<vmem>>, vector<8x1xf32>,
    %c0_23 = arith.constant 0 : index
    %c1_24 = arith.constant 1 : index
    %51 = vector.load %arg5[%c0_23, %c1_24] : memref<8x2xf32, #tpu.memory_space<vmem>>, vector<8x1xf32>
    %52 = arith.mulf %42, %42 : vector<8x256xf32>
    %cst_25 = arith.constant dense<0.000000e+00> : vector<8xf32>
    %53 = vector.multi_reduction <add>, %52, %cst_25 [1] : vector<8x256xf32> to vector<8xf32>
    %54 = vector.shape_cast %53 : vector<8xf32> to vector<8x1xf32>
    %55 = arith.addf %51, %54 : vector<8x1xf32>
    %c0_26 = arith.constant 0 : index
    %c1_27 = arith.constant 1 : index
    %56 = vector.load %arg5[%c0_26, %c1_27] : memref<8x2xf32, #tpu.memory_space<vmem>>, vector<8x1xf32>
    tpu.vector_store %arg5[%c0_26, %c1_27], %55 {strides = array<i32>} : memref<8x2xf32, #tpu.memory_space<vmem>>, vector<8x1xf32>,
    return
  }
  func.func @transform_0(%arg0: i32) -> (i32, i32, i32) {
    %c0_i32 = arith.constant 0 : i32
    %c0_i32_0 = arith.constant 0 : i32
    %c0_i32_1 = arith.constant 0 : i32
    return %arg0, %c0_i32, %c0_i32_0 : i32, i32, i32
  }
  func.func @transform_1(%arg0: i32) -> (i32, i32) {
    %c0_i32 = arith.constant 0 : i32
    %c0_i32_0 = arith.constant 0 : i32
    %c0_i32_1 = arith.constant 0 : i32
    return %c0_i32, %c0_i32_0 : i32, i32
  }
  func.func @transform_2(%arg0: i32) -> (i32, i32) {
    %c0_i32 = arith.constant 0 : i32
    %c0_i32_0 = arith.constant 0 : i32
    %c0_i32_1 = arith.constant 0 : i32
    return %c0_i32, %c0_i32_0 : i32, i32
  }
  func.func @transform_3(%arg0: i32) -> (i32, i32, i32) {
    %c0_i32 = arith.constant 0 : i32
    %c0_i32_0 = arith.constant 0 : i32
    %c0_i32_1 = arith.constant 0 : i32
    return %arg0, %c0_i32, %c0_i32_0 : i32, i32, i32
  }
  func.func @transform_4(%arg0: i32) -> (i32, i32) {
    %c0_i32 = arith.constant 0 : i32
    %c0_i32_0 = arith.constant 0 : i32
    %c0_i32_1 = arith.constant 0 : i32
    return %c0_i32, %c0_i32_0 : i32, i32
  }
}

</mosaic_0001>

<llo_original>
// kernel: tpu_custom_call.1
$region0: #{tpu_custom_call.1}
  #allocation0 [shape = 'u32[]', space=smem, size = 0x4, offset = 0x4, fixed_abs, tag = 'smem constant byte address 0x4 - core index']
  #allocation1 [shape = 'u32[72,128]{1,0:T(1,128)}', space=vmem, size = 0x9000, scoped, tag = 'internal scratch']
  %s0 = inlined_call_operand.hbm [shape: f32[2,4,256], index: 0, kind: input, shape index: {}]
  %s1 = inlined_call_operand.hbm [shape: f32[8,36], index: 1, kind: input, shape index: {}]
  %s2 = inlined_call_operand.hbm [shape: f32[9,256], index: 2, kind: input, shape index: {}]
  %s3 = inlined_call_operand.hbm [shape: f32[2,8,256], index: 3, kind: output, shape index: {0}]
  %s4 = inlined_call_operand.vmem [shape: f32[8,2], index: 4, kind: output, shape index: {1}]
  %5 = xla_tuple %s3, %s4
  %s6 = sld [smem:[#allocation0]]
  $region69: #{tpu_custom_call.1} parent=0
    _
  %s8 = ssub.s32 1, %s6
  %s9 = scalar_select 0, %s8, %s6
  $region1: #{tpu_custom_call.1} parent=0
    #allocation2 [shape = 'u8[8192]{0}', space=vmem, size = 0x2000, scoped, tag = 'input window, operand 0']
    #allocation3 [shape = 's32[2]{0}', space=sflag, size = 0x8, scoped, tag = 'scoped memory for tpu_custom_call.1']
    #allocation4 [shape = 's32[2]{0}', space=sflag, size = 0x8, scoped, tag = 'scoped memory for tpu_custom_call.1']
    #allocation5 [shape = 'u8[4096]{0}', space=vmem, size = 0x1000, scoped, tag = 'input window, operand 1, single buffered']
    #allocation6 [shape = 's32[1]{0}', space=sflag, size = 0x4, scoped, tag = 'scoped memory for tpu_custom_call.1']
    #allocation7 [shape = 'u8[16384]{0}', space=vmem, size = 0x4000, scoped, tag = 'input window, operand 2, single buffered']
    #allocation8 [shape = 'u8[16384]{0}', space=vmem, size = 0x4000, scoped, tag = 'output window, operand 0']
    %10 = vsyncpa [#allocation3], 0
    %s11 = scalar_lea.sflag [#allocation3], 1
    %12 = vsyncpa %s11, 0
    %13 = vsyncpa [#allocation6], 0
    %14 = vsyncpa [#allocation4], 0
    %s15 = scalar_lea.sflag [#allocation4], 1
    %16 = vsyncpa %s15, 0
    loop: start=0, step=1, limit=4
    $region2: #{tpu_custom_call.1} parent=1 // loop_pre_header
      _
    $region3: #{tpu_custom_call.1} parent=1 // loop_header
      %s18 = sphi 0, %s22
      %p19 = scmp.ge.s32.totalorder %s18, 4
      %s28 = sphi 0, %s30
      %s31 = sphi 0, %s28
      %s32 = sphi 0, %s31
      %s48 = sphi 0, %s32
      %s52 = sphi 0, %s52
      %s54 = sphi 0, %s52
      %s55 = sphi 0, %s54
      %s69 = sphi 0, %s55
      %s73 = sphi 0, %s73
      %s75 = sphi 0, %s73
      %s76 = sphi 0, %s75
      %s90 = sphi 0, %s76
      %s96 = sphi 0, %s98
      %s99 = sphi 0, %s96
      %s100 = sphi 0, %s99
      %s116 = sphi 0, %s100
      %s120 = sphi 0, %s120
      %s122 = sphi 0, %s120
      %s123 = sphi 0, %s122
      %s137 = sphi 0, %s123
    $region4: #{tpu_custom_call.1} parent=1 // loop_header_branch
      %21 = sbr.rel (%p19) target = $region8
    $region5: #{tpu_custom_call.1} parent=1 // loop_body
      %s23 = ssub.s32 %s18, 1
      %s24 = ssub.s32 %s18, 2
      %s25 = sadd.s32 %s18, 1
      %s26 = ssub.s32 %s18, %s25
      %p27 = scmp.eq.s32.totalorder %s26, 0
      %s29 = sadd.s32 %s28, 1
      %s30 = scalar_select %p27, %s28, %s29
      %p33 = pneg %p27
      %p34 = scmp.eq.s32.totalorder %s18, 1
      %p35 = por %p33, %p34
      %p36 = scmp.ne.s32.totalorder %s28, %s31
      %p37 = scmp.eq.s32.totalorder %s18, 0
      %p38 = por %p36, %p37
      %p39 = scmp.ne.s32.totalorder %s28, %s31
      %p40 = scmp.eq.s32.totalorder %s23, 1
      %p41 = por %p39, %p40
      %p42 = scmp.ne.s32.totalorder %s31, %s32
      %p43 = scmp.eq.s32.totalorder %s23, 0
      %p44 = por %p42, %p43
      %p45 = scmp.ne.s32.totalorder %s31, %s32
      %p46 = scmp.eq.s32.totalorder %s24, 1
      %p47 = por %p45, %p46
      %p49 = scmp.ne.s32.totalorder %s32, %s48
      %p50 = scmp.eq.s32.totalorder %s24, 0
      %p51 = por %p49, %p50
      %s53 = sadd.s32 %s52, 1
      %p56 = scmp.eq.s32.totalorder %s18, 1
      %p57 = scmp.ne.s32.totalorder %s52, %s54
      %p58 = scmp.eq.s32.totalorder %s18, 0
      %p59 = por %p57, %p58
      %p60 = scmp.ne.s32.totalorder %s52, %s54
      %p61 = scmp.eq.s32.totalorder %s23, 1
      %p62 = por %p60, %p61
      %p63 = scmp.ne.s32.totalorder %s54, %s55
      %p64 = scmp.eq.s32.totalorder %s23, 0
      %p65 = por %p63, %p64
      %p66 = scmp.ne.s32.totalorder %s54, %s55
      %p67 = scmp.eq.s32.totalorder %s24, 1
      %p68 = por %p66, %p67
      %p70 = scmp.ne.s32.totalorder %s55, %s69
      %p71 = scmp.eq.s32.totalorder %s24, 0
      %p72 = por %p70, %p71
      %s74 = sadd.s32 %s73, 1
      %p77 = scmp.eq.s32.totalorder %s18, 1
      %p78 = scmp.ne.s32.totalorder %s73, %s75
      %p79 = scmp.eq.s32.totalorder %s18, 0
      %p80 = por %p78, %p79
      %p81 = scmp.ne.s32.totalorder %s73, %s75
      %p82 = scmp.eq.s32.totalorder %s23, 1
      %p83 = por %p81, %p82
      %p84 = scmp.ne.s32.totalorder %s75, %s76
      %p85 = scmp.eq.s32.totalorder %s23, 0
      %p86 = por %p84, %p85
      %p87 = scmp.ne.s32.totalorder %s75, %s76
      %p88 = scmp.eq.s32.totalorder %s24, 1
      %p89 = por %p87, %p88
      %p91 = scmp.ne.s32.totalorder %s76, %s90
      %p92 = scmp.eq.s32.totalorder %s24, 0
      %p93 = por %p91, %p92
      %s94 = ssub.s32 %s18, %s25
      %p95 = scmp.eq.s32.totalorder %s94, 0
      %s97 = sadd.s32 %s96, 1
      %s98 = scalar_select %p95, %s96, %s97
      %p101 = pneg %p95
      %p102 = scmp.eq.s32.totalorder %s18, 1
      %p103 = por %p101, %p102
      %p104 = scmp.ne.s32.totalorder %s96, %s99
      %p105 = scmp.eq.s32.totalorder %s18, 0
      %p106 = por %p104, %p105
      %p107 = scmp.ne.s32.totalorder %s96, %s99
      %p108 = scmp.eq.s32.totalorder %s23, 1
      %p109 = por %p107, %p108
      %p110 = scmp.ne.s32.totalorder %s99, %s100
      %p111 = scmp.eq.s32.totalorder %s23, 0
      %p112 = por %p110, %p111
      %p113 = scmp.ne.s32.totalorder %s99, %s100
      %p114 = scmp.eq.s32.totalorder %s24, 1
      %p115 = por %p113, %p114
      %p117 = scmp.ne.s32.totalorder %s100, %s116
      %p118 = scmp.eq.s32.totalorder %s24, 0
      %p119 = por %p117, %p118
      %s121 = sadd.s32 %s120, 1
      %p124 = scmp.eq.s32.totalorder %s18, 1
      %p125 = scmp.ne.s32.totalorder %s120, %s122
      %p126 = scmp.eq.s32.totalorder %s18, 0
      %p127 = por %p125, %p126
      %p128 = scmp.ne.s32.totalorder %s120, %s122
      %p129 = scmp.eq.s32.totalorder %s23, 1
      %p130 = por %p128, %p129
      %p131 = scmp.ne.s32.totalorder %s122, %s123
      %p132 = scmp.eq.s32.totalorder %s23, 0
      %p133 = por %p131, %p132
      %p134 = scmp.ne.s32.totalorder %s122, %s123
      %p135 = scmp.eq.s32.totalorder %s24, 1
      %p136 = por %p134, %p135
      %p138 = scmp.ne.s32.totalorder %s123, %s137
      %p139 = scmp.eq.s32.totalorder %s24, 0
      %p140 = por %p138, %p139
      %p141 = scmp.le.s32.totalorder 1, %s18
      %p142 = scmp.lt.s32.totalorder %s18, 3
      %p143 = pnand %p141, %p142
      %p144 = pneg %p143
      // Predicated region
      $region9: #{tpu_custom_call.1} parent=5 // pred_check
        _
      $region10: #{tpu_custom_call.1} parent=5 // pred_check_branch
        %146 = sbr.rel (%p143) target = $region12
      $region11: #{tpu_custom_call.1} parent=5 // pred_region
        %s147 = ssub.s32 %s18, 1
        // Predicated region
        $region13: #{tpu_custom_call.1} parent=11 // pred_check
          %p148 = pneg %p65
        $region14: #{tpu_custom_call.1} parent=11 // pred_check_branch
          %150 = sbr.rel (%p148) target = $region16
        $region15: #{tpu_custom_call.1} parent=11 // pred_region
          %152 = vsyncadd [#allocation6], 0
          %s154 = sshll.u32 %s1, 4
          %s155 = int_to_ptr.hbm [resolvable:$true] %s154
          %s156 = sshll.u32 [#allocation5], 4
          %s157 = int_to_ptr.vmem [resolvable:$true] %s156
          %159 = dma.hbm_to_vmem [thread:$0]  %s155, 128, %s157, [#allocation6]
        $region16: #{tpu_custom_call.1} parent=11 // pred_fallthru
          _
        // Predicated region
        $region17: #{tpu_custom_call.1} parent=11 // pred_check
          %p160 = pneg %p86
        $region18: #{tpu_custom_call.1} parent=11 // pred_check_branch
          %162 = sbr.rel (%p160) target = $region20
        $region19: #{tpu_custom_call.1} parent=11 // pred_region
          %164 = vsyncadd [#allocation6], 0
          %s165 = sshll.u32 %s2, 4
          %s166 = int_to_ptr.hbm [resolvable:$true] %s165
          %s167 = sshll.u32 [#allocation7], 4
          %s168 = int_to_ptr.vmem [resolvable:$true] %s167
          %173 = dma.hbm_to_vmem [thread:$0]  %s166, 512, %s168, [#allocation6], 256, 256, 16
        $region20: #{tpu_custom_call.1} parent=11 // pred_fallthru
          _
      $region12: #{tpu_custom_call.1} parent=5 // pred_fallthru
        _
      %p174 = scmp.lt.s32.totalorder %s18, 2
      // Predicated region
      $region21: #{tpu_custom_call.1} parent=5 // pred_check
        %p175 = pneg %p174
      $region22: #{tpu_custom_call.1} parent=5 // pred_check_branch
        %177 = sbr.rel (%p175) target = $region24
      $region23: #{tpu_custom_call.1} parent=5 // pred_region
        // Predicated region
        $region25: #{tpu_custom_call.1} parent=23 // pred_check
          %p178 = pneg %p38
        $region26: #{tpu_custom_call.1} parent=23 // pred_check_branch
          %180 = sbr.rel (%p178) target = $region28
        $region27: #{tpu_custom_call.1} parent=23 // pred_region
          %s181 = sand.u32 %s28, 1
          %s182 = scalar_lea.sflag [#allocation3], %s181
          %s183 = sand.u32 %s28, 1
          %s184 = smul.addr %s183, 8
          %s185 = scalar_lea.vmem [#allocation2], %s184
          %187 = vsyncadd %s182, 0
          %s188 = smul.addr %s18, 2
          %s189 = smul.addr %s188, 4
          %s190 = scalar_lea.hbm %s0, %s189
          %s192 = sshll.u32 %s190, 4
          %s193 = int_to_ptr.hbm [resolvable:$true] %s192
          %s194 = sshll.u32 %s185, 4
          %s195 = int_to_ptr.vmem [resolvable:$true] %s194
          %197 = dma.hbm_to_vmem [thread:$0]  %s193, 128, %s195, %s182
        $region28: #{tpu_custom_call.1} parent=23 // pred_fallthru
          _
      $region24: #{tpu_custom_call.1} parent=5 // pred_fallthru
        _
      %p198 = scmp.le.s32.totalorder 1, %s18
      %p199 = scmp.lt.s32.totalorder %s18, 3
      %p200 = pnand %p198, %p199
      %p201 = pneg %p200
      // Predicated region
      $region29: #{tpu_custom_call.1} parent=5 // pred_check
        _
      $region30: #{tpu_custom_call.1} parent=5 // pred_check_branch
        %203 = sbr.rel (%p200) target = $region32
      $region31: #{tpu_custom_call.1} parent=5 // pred_region
        %s204 = ssub.s32 %s18, 1
        %s205 = sand.u32 %s31, 1
        %s206 = scalar_lea.sflag [#allocation3], %s205
        %s207 = sand.u32 %s31, 1
        %s208 = smul.addr %s207, 8
        %s209 = scalar_lea.vmem [#allocation2], %s208
        // Predicated region
        $region33: #{tpu_custom_call.1} parent=31 // pred_check
          %p210 = pneg %p44
        $region34: #{tpu_custom_call.1} parent=31 // pred_check_branch
          %212 = sbr.rel (%p210) target = $region36
        $region35: #{tpu_custom_call.1} parent=31 // pred_region
          %214 = dma.done %s206, 128
        $region36: #{tpu_custom_call.1} parent=31 // pred_fallthru
          _
        // Predicated region
        $region37: #{tpu_custom_call.1} parent=31 // pred_check
          %p215 = pneg %p65
        $region38: #{tpu_custom_call.1} parent=31 // pred_check_branch
          %217 = sbr.rel (%p215) target = $region40
        $region39: #{tpu_custom_call.1} parent=31 // pred_region
          %219 = dma.done [#allocation6], 128
        $region40: #{tpu_custom_call.1} parent=31 // pred_fallthru
          _
        // Predicated region
        $region41: #{tpu_custom_call.1} parent=31 // pred_check
          %p220 = pneg %p86
        $region42: #{tpu_custom_call.1} parent=31 // pred_check_branch
          %222 = sbr.rel (%p220) target = $region44
        $region43: #{tpu_custom_call.1} parent=31 // pred_region
          %224 = dma.done [#allocation6], 512
        $region44: #{tpu_custom_call.1} parent=31 // pred_fallthru
          _
        %s225 = sand.u32 %s31, 1
        %s226 = scalar_lea.sflag [#allocation3], %s225
        %s227 = sand.u32 %s31, 1
        %s228 = smul.addr %s227, 8
        %s229 = scalar_lea.vmem [#allocation2], %s228
        %p230 = pneg %p44
        %p231 = pneg %p41
        %p232 = pneg %p65
        %p233 = pneg %p62
        %p234 = pneg %p86
        %p235 = pneg %p83
        %p236 = pneg %p112
        %p237 = pneg %p109
        %s238 = sand.u32 %s99, 1
        %s239 = scalar_lea.sflag [#allocation4], %s238
        %s240 = sand.u32 %s99, 1
        %s241 = smul.addr %s240, 16
        %s242 = scalar_lea.vmem [#allocation8], %s241
        %p243 = pneg %p133
        %p244 = pneg %p130
        %p245 = scmp.eq.s32.totalorder %s23, 0
        // Predicated region
        $region45: #{tpu_custom_call.1} parent=31 // pred_check
          %p246 = pneg %p245
        $region46: #{tpu_custom_call.1} parent=31 // pred_check_branch
          %248 = sbr.rel (%p246) target = $region48
        $region47: #{tpu_custom_call.1} parent=31 // pred_region
          %vm249 = vcmask 15360
          %250 = vst.msk [vmem:[%s4] sm:$0xff] %vm249, 0.0
        $region48: #{tpu_custom_call.1} parent=31 // pred_fallthru
          _
        %v251 = vld [vmem:[%s209] sm:$0xff]
        %253 = vst [vmem:[#allocation1] ss:$2 sm:$0xff] %v251
        %v254 = vld.sshfl [vmem:[#allocation1] sm:$0xff pattern:$0x75316420]
        %v255 = vld.sshfl [vmem:[#allocation1 + $0x8] sm:$0xff pattern:$0x75316420]
        %258 = vrot.lane.b32.xlu0 %v254, 17
        %v259 = vpop.permute.xlu0 %258
        %260 = vrot.lane.b32.xlu0 %v255, 17
        %v261 = vpop.permute.xlu0 %260
        %v262 = vlaneseq
        %v263 = vand.u32 %v262, 127
        %vm264 = vcmp.lt.s32.totalorder %v263, 17
        %v265 = vsel %vm264, %v259, %v261
        %v266 = vsel %vm264, %v261, %v259
        %v267 = vld [vmem:[#allocation7] ss:$8 sm:$0x3]
        %v269 = vperm.slane %v267, 0
        %v270 = vperm.slane %v267, 1
        %v273 = vmul.f32 %v266, %v269
        %v274 = vmul.f32 %v265, %v270
        %275 = vst [vmem:[#allocation1] ss:$2 sm:$0xff] %v251
        %v276 = vld.sshfl [vmem:[#allocation1] sm:$0xff pattern:$0x75316420]
        %v277 = vld.sshfl [vmem:[#allocation1 + $0x8] sm:$0xff pattern:$0x75316420]
        %280 = vrot.lane.b32.xlu0 %v276, 16
        %v281 = vpop.permute.xlu0 %280
        %282 = vrot.lane.b32.xlu0 %v277, 16
        %v283 = vpop.permute.xlu0 %282
        %vm284 = vcmp.lt.s32.totalorder %v263, 16
        %v285 = vsel %vm284, %v281, %v283
        %v286 = vsel %vm284, %v283, %v281
        %s287 = scalar_lea.vmem [#allocation7], 1
        %v288 = vld [vmem:[%s287] ss:$8 sm:$0x3]
        %v290 = vperm.slane %v288, 0
        %v291 = vperm.slane %v288, 1
        %v294 = vmul.f32 %v286, %v290
        %v295 = vmul.f32 %v285, %v291
        %296 = vst [vmem:[#allocation1] ss:$2 sm:$0xff] %v251
        %v297 = vld.sshfl [vmem:[#allocation1] sm:$0xff pattern:$0x75316420]
        %v298 = vld.sshfl [vmem:[#allocation1 + $0x8] sm:$0xff pattern:$0x75316420]
        %301 = vrot.lane.b32.xlu0 %v297, 15
        %v302 = vpop.permute.xlu0 %301
        %303 = vrot.lane.b32.xlu0 %v298, 15
        %v304 = vpop.permute.xlu0 %303
        %vm305 = vcmp.lt.s32.totalorder %v263, 15
        %v306 = vsel %vm305, %v302, %v304
        %v307 = vsel %vm305, %v304, %v302
        %s308 = scalar_lea.vmem [#allocation7], 2
        %v309 = vld [vmem:[%s308] ss:$8 sm:$0x3]
        %v311 = vperm.slane %v309, 0
        %v312 = vperm.slane %v309, 1
        %v315 = vmul.f32 %v307, %v311
        %v316 = vmul.f32 %v306, %v312
        %317 = vst [vmem:[#allocation1] ss:$2 sm:$0xff] %v251
        %v318 = vld.sshfl [vmem:[#allocation1] sm:$0xff pattern:$0x75316420]
        %v319 = vld.sshfl [vmem:[#allocation1 + $0x8] sm:$0xff pattern:$0x75316420]
        %322 = vrot.lane.b32.xlu0 %v318, 1
        %v323 = vpop.permute.xlu0 %322
        %324 = vrot.lane.b32.xlu0 %v319, 1
        %v325 = vpop.permute.xlu0 %324
        %vm326 = vcmp.lt.s32.totalorder %v263, 1
        %v327 = vsel %vm326, %v323, %v325
        %v328 = vsel %vm326, %v325, %v323
        %s329 = scalar_lea.vmem [#allocation7], 3
        %v330 = vld [vmem:[%s329] ss:$8 sm:$0x3]
        %v332 = vperm.slane %v330, 0
        %v333 = vperm.slane %v330, 1
        %v336 = vmul.f32 %v328, %v332
        %v337 = vmul.f32 %v327, %v333
        %s338 = scalar_lea.vmem [#allocation7], 4
        %v339 = vld [vmem:[%s338] ss:$8 sm:$0x3]
        %v341 = vperm.slane %v339, 0
        %v342 = vperm.slane %v339, 1
        %v343 = vrot.slane %v342, 4
        %vm344 = vcmask 1043456
        %v345 = vsel %vm344, %v341, %v343
        %v347 = vmul.f32 %v251, %v345
        %348 = vst [vmem:[#allocation1] ss:$2 sm:$0xff] %v251
        %v349 = vld.sshfl [vmem:[#allocation1] sm:$0xff pattern:$0x75316420]
        %v350 = vld.sshfl [vmem:[#allocation1 + $0x8] sm:$0xff pattern:$0x75316420]
        %353 = vrot.lane.b32.xlu0 %v349, 127
        %v354 = vpop.permute.xlu0 %353
        %355 = vrot.lane.b32.xlu0 %v350, 127
        %v356 = vpop.permute.xlu0 %355
        %vm357 = vcmp.lt.s32.totalorder %v263, 127
        %v358 = vsel %vm357, %v354, %v356
        %v359 = vsel %vm357, %v356, %v354
        %s360 = scalar_lea.vmem [#allocation7], 5
        %v361 = vld [vmem:[%s360] ss:$8 sm:$0x3]
        %v363 = vperm.slane %v361, 0
        %v364 = vperm.slane %v361, 1
        %v367 = vmul.f32 %v358, %v363
        %v368 = vmul.f32 %v359, %v364
        %369 = vst [vmem:[#allocation1] ss:$2 sm:$0xff] %v251
        %v370 = vld.sshfl [vmem:[#allocation1] sm:$0xff pattern:$0x75316420]
        %v371 = vld.sshfl [vmem:[#allocation1 + $0x8] sm:$0xff pattern:$0x75316420]
        %374 = vrot.lane.b32.xlu0 %v370, 113
        %v375 = vpop.permute.xlu0 %374
        %376 = vrot.lane.b32.xlu0 %v371, 113
        %v377 = vpop.permute.xlu0 %376
        %vm378 = vcmp.lt.s32.totalorder %v263, 113
        %v379 = vsel %vm378, %v375, %v377
        %v380 = vsel %vm378, %v377, %v375
        %s381 = scalar_lea.vmem [#allocation7], 6
        %v382 = vld [vmem:[%s381] ss:$8 sm:$0x3]
        %v384 = vperm.slane %v382, 0
        %v385 = vperm.slane %v382, 1
        %v388 = vmul.f32 %v379, %v384
        %v389 = vmul.f32 %v380, %v385
        %390 = vst [vmem:[#allocation1] ss:$2 sm:$0xff] %v251
        %v391 = vld.sshfl [vmem:[#allocation1] sm:$0xff pattern:$0x75316420]
        %v392 = vld.sshfl [vmem:[#allocation1 + $0x8] sm:$0xff pattern:$0x75316420]
        %395 = vrot.lane.b32.xlu0 %v391, 112
        %v396 = vpop.permute.xlu0 %395
        %397 = vrot.lane.b32.xlu0 %v392, 112
        %v398 = vpop.permute.xlu0 %397
        %vm399 = vcmp.lt.s32.totalorder %v263, 112
        %v400 = vsel %vm399, %v396, %v398
        %v401 = vsel %vm399, %v398, %v396
        %s402 = scalar_lea.vmem [#allocation7], 7
        %v403 = vld [vmem:[%s402] ss:$8 sm:$0x3]
        %v405 = vperm.slane %v403, 0
        %v406 = vperm.slane %v403, 1
        %v409 = vmul.f32 %v400, %v405
        %v410 = vmul.f32 %v401, %v406
        %411 = vst [vmem:[#allocation1] ss:$2 sm:$0xff] %v251
        %v412 = vld.sshfl [vmem:[#allocation1] sm:$0xff pattern:$0x75316420]
        %v413 = vld.sshfl [vmem:[#allocation1 + $0x8] sm:$0xff pattern:$0x75316420]
        %416 = vrot.lane.b32.xlu0 %v412, 111
        %v417 = vpop.permute.xlu0 %416
        %418 = vrot.lane.b32.xlu0 %v413, 111
        %v419 = vpop.permute.xlu0 %418
        %vm420 = vcmp.lt.s32.totalorder %v263, 111
        %v421 = vsel %vm420, %v417, %v419
        %v422 = vsel %vm420, %v419, %v417
        %s423 = scalar_lea.vmem [#allocation7], 16
        %v424 = vld [vmem:[%s423] ss:$8 sm:$0x3]
        %v426 = vperm.slane %v424, 0
        %v427 = vperm.slane %v424, 1
        %v430 = vmul.f32 %v421, %v426
        %v431 = vmul.f32 %v422, %v427
        %v434 = vrot.slane %v294, 4
        %v435 = vrot.slane %v295, 4
        %v440 = vrot.slane %v336, 4
        %v441 = vrot.slane %v337, 4
        %445 = vst [vmem:[#allocation1] ss:$2 sm:$0xff] %v347
        %v446 = vld.sshfl [vmem:[#allocation1] sm:$0xff pattern:$0x75316420]
        %v447 = vld.sshfl [vmem:[#allocation1 + $0x8] sm:$0xff pattern:$0x75316420]
        %v452 = vrot.slane %v367, 4
        %v453 = vrot.slane %v368, 4
        %v458 = vrot.slane %v409, 4
        %v459 = vrot.slane %v410, 4
        %v462 = vsel %vm344, %v273, %v434
        %v463 = vsel %vm344, %v274, %v435
        %v464 = vsel %vm344, %v315, %v440
        %v465 = vsel %vm344, %v316, %v441
        %v466 = vsel %vm344, %v446, %v452
        %v467 = vsel %vm344, %v447, %v453
        %v468 = vsel %vm344, %v388, %v458
        %v469 = vsel %vm344, %v389, %v459
        %v470 = vld [vmem:[#allocation5] sm:$0xff]
        %vm471 = vcmask 293888
        %v473 = vsel %vm471, %v470, 0
        %v476 = vsel %vm344, %v430, 0
        %v479 = vsel %vm344, %v431, 0
        %481 = vmatpush.msra.mxu0 0.0
        %482 = vmatpush.msra.mxu0 0.0
        %483 = vmatpush.msra.mxu0 0.0
        %484 = vmatpush.msra.mxu0 0.0
        %485 = vmatpush.msra.mxu0 0.0
        %486 = vmatpush.msra.mxu0 0.0
        %487 = vmatpush.msra.mxu0 0.0
        %488 = vmatpush.msra.mxu0 0.0
        %489 = vmatpush.msra.mxu0 0.0
        %490 = vmatpush.msra.mxu0 0.0
        %491 = vmatpush.msra.mxu0 0.0
        %492 = vmatpush.msra.mxu0 %v476
        %493 = vmatpush.msra.mxu0 %v468
        %494 = vmatpush.msra.mxu0 %v466
        %495 = vmatpush.msra.mxu0 %v464
        %496 = vmatpush.msra.mxu0 %v462
        %497 = vmatmul.f32.gmra.mxu0 %v473
        %v498 = vpop.f32.mrf.mxu0
        %v499 = vadd.f32 0.0, %v498
        %500 = vdwg.mxu0
        %501 = vmatpush.msra.mxu0 0.0
        %502 = vmatpush.msra.mxu0 0.0
        %503 = vmatpush.msra.mxu0 0.0
        %504 = vmatpush.msra.mxu0 0.0
        %505 = vmatpush.msra.mxu0 0.0
        %506 = vmatpush.msra.mxu0 0.0
        %507 = vmatpush.msra.mxu0 0.0
        %508 = vmatpush.msra.mxu0 0.0
        %509 = vmatpush.msra.mxu0 0.0
        %510 = vmatpush.msra.mxu0 0.0
        %511 = vmatpush.msra.mxu0 0.0
        %512 = vmatpush.msra.mxu0 %v479
        %513 = vmatpush.msra.mxu0 %v469
        %514 = vmatpush.msra.mxu0 %v467
        %515 = vmatpush.msra.mxu0 %v465
        %516 = vmatpush.msra.mxu0 %v463
        %517 = vmatmul.f32.gmra.mxu0 %v473
        %v518 = vpop.f32.mrf.mxu0
        %v519 = vadd.f32 0.0, %v518
        %520 = vdwg.mxu0
        %521 = vst [vmem:[%s242] sm:$0xff] %v499
        %522 = vst [vmem:[%s242 + $0x8] sm:$0xff] %v519
        %v523 = vld [vmem:[%s4] sm:$0xff]
        %v524 = vadd.f32 %v499, %v519
        %525 = vadd.xlane.f32.xlu0 %v524
        %v526 = vpop.xlane.xlu0 %525
        %v527 = vadd.f32 %v523, %v526
        %vm528 = vcmask 7168
        %529 = vst.msk [vmem:[%s4] sm:$0xff] %vm528, %v527
        %v530 = vld [vmem:[%s4] sm:$0xff]
        %v531 = vmul.f32 %v499, %v499
        %v532 = vmul.f32 %v519, %v519
        %v533 = vadd.f32 %v531, %v532
        %534 = vadd.xlane.f32.xlu0 %v533
        %v535 = vpop.xlane.xlu0 %534
        %v536 = vadd.f32 %v530, %v535
        %vm537 = vcmask 15368
        %538 = vst.msk [vmem:[%s4] sm:$0xff] %vm537, %v536
        %s539 = sand.u32 %s99, 1
        %s540 = scalar_lea.sflag [#allocation4], %s539
        %s541 = sand.u32 %s99, 1
        %s542 = smul.addr %s541, 16
        %s543 = scalar_lea.vmem [#allocation8], %s542
        // Predicated region
        $region49: #{tpu_custom_call.1} parent=31 // pred_check
          %p544 = pneg %p109
        $region50: #{tpu_custom_call.1} parent=31 // pred_check_branch
          %546 = sbr.rel (%p544) target = $region52
        $region51: #{tpu_custom_call.1} parent=31 // pred_region
          %548 = vsyncadd %s540, 0
          %s549 = smul.addr %s23, 2
          %s550 = smul.addr %s549, 8
          %s551 = scalar_lea.hbm %s3, %s550
          %s553 = sshll.u32 %s543, 4
          %s554 = int_to_ptr.vmem [resolvable:$true] %s553
          %s555 = sshll.u32 %s551, 4
          %s556 = int_to_ptr.hbm [resolvable:$true] %s555
          %558 = dma.vmem_to_hbm [thread:$0]  %s554, 256, %s556, %s540
        $region52: #{tpu_custom_call.1} parent=31 // pred_fallthru
          _
        // Predicated region
        $region53: #{tpu_custom_call.1} parent=31 // pred_check
          %p559 = pneg %p130
        $region54: #{tpu_custom_call.1} parent=31 // pred_check_branch
          %561 = sbr.rel (%p559) target = $region56
        $region55: #{tpu_custom_call.1} parent=31 // pred_region
          _
        $region56: #{tpu_custom_call.1} parent=31 // pred_fallthru
          _
        // Predicated region
        $region57: #{tpu_custom_call.1} parent=31 // pred_check
          %p562 = pneg %p130
        $region58: #{tpu_custom_call.1} parent=31 // pred_check_branch
          %564 = sbr.rel (%p562) target = $region60
        $region59: #{tpu_custom_call.1} parent=31 // pred_region
          _
        $region60: #{tpu_custom_call.1} parent=31 // pred_fallthru
          _
      $region32: #{tpu_custom_call.1} parent=5 // pred_fallthru
        _
      %p565 = scmp.le.s32.totalorder 2, %s18
      // Predicated region
      $region61: #{tpu_custom_call.1} parent=5 // pred_check
        %p566 = pneg %p565
      $region62: #{tpu_custom_call.1} parent=5 // pred_check_branch
        %568 = sbr.rel (%p566) target = $region64
      $region63: #{tpu_custom_call.1} parent=5 // pred_region
        %s569 = ssub.s32 %s18, 2
        // Predicated region
        $region65: #{tpu_custom_call.1} parent=63 // pred_check
          %p570 = pneg %p115
        $region66: #{tpu_custom_call.1} parent=63 // pred_check_branch
          %572 = sbr.rel (%p570) target = $region68
        $region67: #{tpu_custom_call.1} parent=63 // pred_region
          %s573 = sand.u32 %s100, 1
          %s574 = scalar_lea.sflag [#allocation4], %s573
          %s575 = sand.u32 %s100, 1
          %s576 = smul.addr %s575, 16
          %s577 = scalar_lea.vmem [#allocation8], %s576
          %579 = dma.done %s574, 256
        $region68: #{tpu_custom_call.1} parent=63 // pred_fallthru
          _
      $region64: #{tpu_custom_call.1} parent=5 // pred_fallthru
        _
    $region6: #{tpu_custom_call.1} parent=1 // loop_footer
      %s22 = sadd.s32 1, %s18
    $region7: #{tpu_custom_call.1} parent=1 // loop_footer_branch
      %17 = sbr.rel target = $region3
    $region8: #{tpu_custom_call.1} parent=1 // loop_exit
      _
    %580 = vsyncpa [#allocation3], 1
    %s581 = scalar_lea.sflag [#allocation3], 1
    %582 = vsyncpa %s581, 1
    %583 = vsyncpa [#allocation6], 1
    %584 = vsyncpa [#allocation4], 1
    %s585 = scalar_lea.sflag [#allocation4], 1
    %586 = vsyncpa %s585, 1

</llo_original>
